<compile_context>
chip_gen: v6e
topology: v6e:2x2x1
jax: 0.10.0
libtpu: 0.0.40
codegen_flags: <defaults>
</compile_context>

<pallas_src>
import functools

import jax
import jax.numpy as jnp
from jax.experimental import pallas as pl
from jax.experimental.pallas import tpu as pltpu

EPS = 1e-5                       # PyTorch BatchNorm default eps
_VMEM_LIMIT = 32 * 1024 * 1024   # safe on v5e/v6e (128 MiB) and v7x (64 MiB)


def _round_up(x, m):
    return (x + m - 1) // m * m


# ----------------------------------------------------------------------------
# Pallas kernels
# ----------------------------------------------------------------------------
def _dense_x4(x_ref, w_refs, b_refs, xc_ref, c0p, c1):
    """Compute x4 (f32, [c2, T]) for the current pixel tile.

    x_ref:  [1, c0p, T] zero-padded x0 tile (storage dtype).
    w_refs: per-layer packed weights [cout, K] (storage dtype); the K axis is
            the sublane-packed concat layout [x0(c0p) | x1 | x2 | x3] with
            zero columns over the x0 padding rows.
    b_refs: folded biases [cout, 1], f32.
    xc_ref: [c0p + 3*c1, T] VMEM scratch holding the packed concat activations.
    """
    offs = (c0p, c0p + c1, c0p + 2 * c1, c0p + 3 * c1)
    xc_ref[:c0p, :] = x_ref[0]                     # stage padded x0
    y = None
    for li in range(4):
        y = jnp.dot(w_refs[li][...], xc_ref[:offs[li], :],
                    preferred_element_type=jnp.float32)
        y = jnp.maximum(y + b_refs[li][...], 0.0)  # bias + ReLU in f32
        if li < 3:
            xc_ref[offs[li]:offs[li + 1], :] = y.astype(xc_ref.dtype)
    return y


def _dense_fwd_kernel(x_ref, w1, b1, w2, b2, w3, b3, w4, b4,
                      o_ref, xc_ref, *, c0p, c1):
    x4 = _dense_x4(x_ref, (w1, w2, w3, w4), (b1, b2, b3, b4), xc_ref, c0p, c1)
    o_ref[0] = x4.astype(o_ref.dtype)


def _dense_max_kernel(x_ref, w1, b1, w2, b2, w3, b3, w4, b4,
                      mx_ref, xc_ref, *, c0p, c1, hw, tile):
    """SE squeeze: per-(batch, channel) max over this pixel tile (no o store)."""
    x4 = _dense_x4(x_ref, (w1, w2, w3, w4), (b1, b2, b3, b4), xc_ref, c0p, c1)
    if hw % tile != 0:
        # Padded pixel columns go through ReLU(bias-chain) and could win the
        # max; zero them (x4 >= 0, so 0 never beats a valid column).
        col = (pl.program_id(1) * tile
               + jax.lax.broadcasted_iota(jnp.int32, x4.shape, 1))
        x4 = jnp.where(col < hw, x4, 0.0)
    mx_ref[0, 0] = jnp.max(x4, axis=1, keepdims=True)      # [c2, 1]


def _dense_scale_kernel(x_ref, s_ref, w1, b1, w2, b2, w3, b3, w4, b4,
                        o_ref, xc_ref, *, c0p, c1):
    """Recompute x4 and apply the SE channel scale before the single store."""
    x4 = _dense_x4(x_ref, (w1, w2, w3, w4), (b1, b2, b3, b4), xc_ref, c0p, c1)
    o_ref[0] = (x4 * s_ref[0]).astype(o_ref.dtype)


# ----------------------------------------------------------------------------
# Parameter construction / BN folding (plain-JAX glue)
# ----------------------------------------------------------------------------
def init_params(channel_list, key):
    c0, c1, c2 = channel_list
    cfc = c2 // 16
    keys = iter(jax.random.split(key, 64))

    def rnd(shape, scale=0.1):
        return scale * jax.random.normal(next(keys), shape, dtype=jnp.float32)

    def bn(c):
        return dict(gamma=1.0 + rnd((c,)), beta=rnd((c,)),
                    mean=rnd((c,)), var=1.0 + 0.1 * jnp.abs(rnd((c,))))

    return {
        # conv weights stored as [Cin, Cout] (PyTorch conv weight is [Cout, Cin, 1, 1])
        "w1": rnd((c0, c1)), "b1": rnd((c1,)),
        "w2": rnd((c0 + c1, c1)), "b2": rnd((c1,)),
        "w3": rnd((c0 + 2 * c1, c1)), "b3": rnd((c1,)),
        "w4": rnd((c0 + 3 * c1, c2)), "b4": rnd((c2,)),
        "bn1": bn(c1), "bn2": bn(c1), "bn3": bn(c1), "bn4": bn(c2),
        # fc weights stored as [in, out] (PyTorch Linear weight is [out, in])
        "wfc1": rnd((c2, cfc)), "bfc1": rnd((cfc,)),
        "wfc2": rnd((cfc, c2)), "bfc2": rnd((c2,)),
        "bnfc1": bn(cfc), "bnfc2": bn(c2),
    }


def _fold_bn(w, b, bnp):
    """Fold eval-mode BN into x@w + b (w: [Cin, Cout], b: [Cout])."""
    scale = bnp["gamma"] / jnp.sqrt(bnp["var"] + EPS)
    return w * scale[None, :], (b - bnp["mean"]) * scale + bnp["beta"]


def _prep_weights(params, c0, c0p, dtype):
    """BN-fold each 1x1 conv, transpose to [Cout, K], and insert zero columns
    over the x0 sublane-padding rows so each layer is one packed matmul."""
    out = []
    for i in (1, 2, 3, 4):
        w, b = _fold_bn(params[f"w{i}"], params[f"b{i}"], params[f"bn{i}"])
        wt = w.T                                              # [cout, Ktrue]
        pad = jnp.zeros((wt.shape[0], c0p - c0), wt.dtype)
        wp = jnp.concatenate([wt[:, :c0], pad, wt[:, c0:]], axis=1)
        out.append(wp.astype(dtype))
        out.append(b[:, None].astype(jnp.float32))            # [cout, 1] f32
    return tuple(out)


# ----------------------------------------------------------------------------
# Wrapper
# ----------------------------------------------------------------------------
def dense_net_2d(points, params, channel_list, seblock=False,
                 act_dtype=jnp.bfloat16, max_tile=1024):
    """points: [B, C0, nsample, npoint] (NCHW, like PyTorch) -> [B, C2, nsample, npoint].

    Output is stored in `act_dtype` (default bf16; pass jnp.float32 for strict
    f32 parity).  Compute (MXU accumulation, bias/ReLU/max/scale) is f32.
    """
    c0, c1, c2 = channel_list
    B, C0, H, W = points.shape
    assert C0 == c0, (C0, c0)
    HW = H * W
    c0p = max(8, _round_up(c0, 8))          # x0 padded to full sublane groups
    kpad = c0p + 3 * c1

    # Tile the pixel axis in 128-lane multiples; pad HW to n_tiles*tile so
    # every block is lane-dense and per-block VMEM is bounded.
    if HW <= max_tile:
        tile = _round_up(HW, 128)
        n_tiles = 1
    else:
        tile = max_tile
        n_tiles = pl.cdiv(HW, tile)
    hw_pad = n_tiles * tile

    # NCHW -> [B, c0p, hw_pad]: pure reshape (no transpose) + zero pad.  The
    # input stream (c0 channels) is tiny next to the c2-channel output.
    x = points.reshape(B, c0, HW).astype(act_dtype)
    x = jnp.pad(x, ((0, 0), (0, c0p - c0), (0, hw_pad - HW)))

    wb = _prep_weights(params, c0, c0p, act_dtype)

    x_spec = pl.BlockSpec((1, c0p, tile), lambda b, j: (b, 0, j))
    wb_specs = [pl.BlockSpec(a.shape, lambda b, j: (0, 0)) for a in wb]
    o_spec = pl.BlockSpec((1, c2, tile), lambda b, j: (b, 0, j))
    scratch = [pltpu.VMEM((kpad, tile), act_dtype)]
    cparams = pltpu.CompilerParams(
        dimension_semantics=("parallel", "parallel"),
        vmem_limit_bytes=_VMEM_LIMIT)

    if not seblock:
        out = pl.pallas_call(
            functools.partial(_dense_fwd_kernel, c0p=c0p, c1=c1),
            out_shape=jax.ShapeDtypeStruct((B, c2, hw_pad), act_dtype),
            grid=(B, n_tiles),
            in_specs=[x_spec] + wb_specs,
            out_specs=o_spec,
            scratch_shapes=scratch,
            compiler_params=cparams,
        )(x, *wb)
    else:
        # Pass 1: max-only SE squeeze.  Emits one partial max per pixel tile
        # (fully "parallel" grid); dense activations never touch HBM here.
        mx = pl.pallas_call(
            functools.partial(_dense_max_kernel, c0p=c0p, c1=c1, hw=HW, tile=tile),
            out_shape=jax.ShapeDtypeStruct((B, n_tiles, c2, 1), jnp.float32),
            grid=(B, n_tiles),
            in_specs=[x_spec] + wb_specs,
            out_specs=pl.BlockSpec((1, 1, c2, 1), lambda b, j: (b, j, 0, 0)),
            scratch_shapes=scratch,
            compiler_params=cparams,
        )(x, *wb)
        se = jnp.max(mx[:, :, :, 0], axis=1)                  # [B, c2] f32

        # Tiny SE MLP (c2 -> c2//16 -> c2) with folded eval-mode BatchNorm1d;
        # plain JAX, f32 — not the hot path.
        wf1, bf1 = _fold_bn(params["wfc1"], params["bfc1"], params["bnfc1"])
        wf2, bf2 = _fold_bn(params["wfc2"], params["bfc2"], params["bnfc2"])
        h = jnp.maximum(se @ wf1 + bf1[None, :], 0.0)
        s = jax.nn.sigmoid(h @ wf2 + bf2[None, :])            # [B, c2]
        s_col = s.astype(jnp.float32)[:, :, None]             # [B, c2, 1]

        # Pass 2: recompute x4 per tile (cheap: K <= c0p+3*c1) and apply the
        # channel scale before the single HBM store — one output write instead
        # of write + read + write.
        out = pl.pallas_call(
            functools.partial(_dense_scale_kernel, c0p=c0p, c1=c1),
            out_shape=jax.ShapeDtypeStruct((B, c2, hw_pad), act_dtype),
            grid=(B, n_tiles),
            in_specs=[x_spec,
                      pl.BlockSpec((1, c2, 1), lambda b, j: (b, 0, 0))]
                     + wb_specs,
            out_specs=o_spec,
            scratch_shapes=scratch,
            compiler_params=cparams,
        )(x, s_col, *wb)

    if hw_pad != HW:
        out = out[:, :, :HW]
    # [B, C2, HW] -> NCHW: pure reshape, no transpose.
    return out.reshape(B, c2, H, W)


# ----------------------------------------------------------------------------
# Pure-JAX reference (eval-mode BN, unfolded) for correctness check
# ----------------------------------------------------------------------------
def reference(points, params, channel_list, seblock=False):
    def conv_bn_relu(x, w, b, bnp):
        y = jnp.einsum("bchw,co->bohw", x, w) + b[None, :, None, None]
        y = (y - bnp["mean"][None, :, None, None]) / jnp.sqrt(
            bnp["var"] + EPS)[None, :, None, None]
        y = y * bnp["gamma"][None, :, None, None] + bnp["beta"][None, :, None, None]
        return jnp.maximum(y, 0.0)

    x0 = points.astype(jnp.float32)
    x1 = conv_bn_relu(x0, params["w1"], params["b1"], params["bn1"])
    y1 = jnp.concatenate([x0, x1], axis=1)
    x2 = conv_bn_relu(y1, params["w2"], params["b2"], params["bn2"])
    y2 = jnp.concatenate([y1, x2], axis=1)
    x3 = conv_bn_relu(y2, params["w3"], params["b3"], params["bn3"])
    y3 = jnp.concatenate([y2, x3], axis=1)
    x_dense = conv_bn_relu(y3, params["w4"], params["b4"], params["bn4"])

    if seblock:
        se = jnp.max(x_dense, axis=(2, 3))  # [B, C2]

        def fc_bn(x, w, b, bnp):
            y = x @ w + b[None, :]
            y = (y - bnp["mean"][None, :]) / jnp.sqrt(bnp["var"] + EPS)[None, :]
            return y * bnp["gamma"][None, :] + bnp["beta"][None, :]

        se = jnp.maximum(fc_bn(se, params["wfc1"], params["bfc1"], params["bnfc1"]), 0.0)
        se = jax.nn.sigmoid(fc_bn(se, params["wfc2"], params["bfc2"], params["bnfc2"]))
        x_dense = x_dense * se[:, :, None, None]
    return x_dense


# ----------------------------------------------------------------------------
if __name__ == "__main__":
    channel_list = [4, 16, 32]        # [in, mid, out]; out // 16 = 2 for the SE MLP
    B, nsample, npoint = 2, 8, 16     # input: [B, D, nsample, npoint], HW = 128

    key = jax.random.PRNGKey(0)
    k_pts, k_par = jax.random.split(key)
    points = jax.random.normal(k_pts, (B, channel_list[0], nsample, npoint),
                               dtype=jnp.float32)
    params = init_params(channel_list, k_par)

    run = jax.jit(functools.partial(dense_net_2d, channel_list=channel_list),
                  static_argnames=("seblock", "act_dtype"))

    for seblock in (False, True):
        for act_dtype, tol in ((jnp.float32, 2e-3), (jnp.bfloat16, 6e-2)):
            out = run(points, params, seblock=seblock, act_dtype=act_dtype)
            out = jax.block_until_ready(out).astype(jnp.float32)
            ref = reference(points, params, channel_list, seblock=seblock)
            assert out.shape == (B, channel_list[2], nsample, npoint), out.shape
            assert jnp.allclose(out, ref, rtol=tol, atol=tol), (
                f"mismatch (seblock={seblock}, dtype={act_dtype.__name__}): "
                f"max abs err {float(jnp.max(jnp.abs(out - ref)))}")

    print("KERNEL_OK")
</pallas_src>

<mosaic_0001>
module attributes {stable_mosaic.version = 11 : i64} {
  func.func @_dense_fwd_kernel(%arg0: i32, %arg1: i32, %arg2: memref<1x8x128xf32, #tpu.memory_space<vmem>>, %arg3: memref<16x8xf32, #tpu.memory_space<vmem>>, %arg4: memref<16x1xf32, #tpu.memory_space<vmem>>, %arg5: memref<16x24xf32, #tpu.memory_space<vmem>>, %arg6: memref<16x1xf32, #tpu.memory_space<vmem>>, %arg7: memref<16x40xf32, #tpu.memory_space<vmem>>, %arg8: memref<16x1xf32, #tpu.memory_space<vmem>>, %arg9: memref<32x56xf32, #tpu.memory_space<vmem>>, %arg10: memref<32x1xf32, #tpu.memory_space<vmem>>, %arg11: memref<1x32x128xf32, #tpu.memory_space<vmem>>, %arg12: memref<56x128xf32, #tpu.memory_space<vmem>>) attributes {dimension_semantics = [#tpu.dimension_semantics<parallel>, #tpu.dimension_semantics<parallel>], iteration_bounds = array<i64: 2, 1>, scalar_prefetch = 0 : i64, scratch_operands = 1 : i64, tpu.core_type = #tpu.core_type<tc>, window_params = [{transform_indices = @transform_0, window_bounds = array<i64: 1, 8, 128>}, {pipeline_mode = #tpu.pipeline_mode<synchronous>, transform_indices = @transform_1, window_bounds = array<i64: 16, 8>}, {pipeline_mode = #tpu.pipeline_mode<synchronous>, transform_indices = @transform_2, window_bounds = array<i64: 16, 1>}, {pipeline_mode = #tpu.pipeline_mode<synchronous>, transform_indices = @transform_3, window_bounds = array<i64: 16, 24>}, {pipeline_mode = #tpu.pipeline_mode<synchronous>, transform_indices = @transform_4, window_bounds = array<i64: 16, 1>}, {pipeline_mode = #tpu.pipeline_mode<synchronous>, transform_indices = @transform_5, window_bounds = array<i64: 16, 40>}, {pipeline_mode = #tpu.pipeline_mode<synchronous>, transform_indices = @transform_6, window_bounds = array<i64: 16, 1>}, {pipeline_mode = #tpu.pipeline_mode<synchronous>, transform_indices = @transform_7, window_bounds = array<i64: 32, 56>}, {pipeline_mode = #tpu.pipeline_mode<synchronous>, transform_indices = @transform_8, window_bounds = array<i64: 32, 1>}, {transform_indices = @transform_9, window_bounds = array<i64: 1, 32, 128>}]} {
    %c0 = arith.constant 0 : index
    %c0_0 = arith.constant 0 : index
    %c0_1 = arith.constant 0 : index
    %0 = vector.load %arg2[%c0, %c0_0, %c0_1] : memref<1x8x128xf32, #tpu.memory_space<vmem>>, vector<1x8x128xf32>
    %1 = vector.shape_cast %0 : vector<1x8x128xf32> to vector<8x128xf32>
    %c0_2 = arith.constant 0 : index
    %c0_3 = arith.constant 0 : index
    %2 = vector.load %arg12[%c0_2, %c0_3] : memref<56x128xf32, #tpu.memory_space<vmem>>, vector<8x128xf32>
    tpu.vector_store %arg12[%c0_2, %c0_3], %1 {strides = array<i32>} : memref<56x128xf32, #tpu.memory_space<vmem>>, vector<8x128xf32>,
    %c0_4 = arith.constant 0 : index
    %c0_5 = arith.constant 0 : index
    %3 = vector.load %arg3[%c0_4, %c0_5] : memref<16x8xf32, #tpu.memory_space<vmem>>, vector<16x8xf32>
    %c0_6 = arith.constant 0 : index
    %c0_7 = arith.constant 0 : index
    %4 = vector.load %arg12[%c0_6, %c0_7] : memref<56x128xf32, #tpu.memory_space<vmem>>, vector<8x128xf32>
    %cst = arith.constant dense<0.000000e+00> : vector<16x128xf32>
    %5 = tpu.matmul %3, %4, %cst {dimension_numbers = #tpu.dot_dimension_numbers<[1], [0], [0], [1], [0, 0, 1, 1], [], []>} : vector<16x8xf32>, vector<8x128xf32>, vector<16x128xf32> -> vector<16x128xf32>
    %c0_8 = arith.constant 0 : index
    %c0_9 = arith.constant 0 : index
    %6 = vector.load %arg4[%c0_8, %c0_9] : memref<16x1xf32, #tpu.memory_space<vmem>>, vector<16x1xf32>
    %7 = vector.broadcast %6 : vector<16x1xf32> to vector<16x128xf32>
    %8 = arith.addf %5, %7 : vector<16x128xf32>
    %cst_10 = arith.constant 0.000000e+00 : f32
    %9 = vector.broadcast %cst_10 : f32 to vector<16x128xf32>
    %10 = arith.maximumf %8, %9 : vector<16x128xf32>
    %c8 = arith.constant 8 : index
    %c0_11 = arith.constant 0 : index
    %11 = vector.load %arg12[%c8, %c0_11] : memref<56x128xf32, #tpu.memory_space<vmem>>, vector<16x128xf32>
    tpu.vector_store %arg12[%c8, %c0_11], %10 {strides = array<i32>} : memref<56x128xf32, #tpu.memory_space<vmem>>, vector<16x128xf32>,
    %c0_12 = arith.constant 0 : index
    %c0_13 = arith.constant 0 : index
    %12 = vector.load %arg5[%c0_12, %c0_13] : memref<16x24xf32, #tpu.memory_space<vmem>>, vector<16x24xf32>
    %c0_14 = arith.constant 0 : index
    %c0_15 = arith.constant 0 : index
    %13 = vector.load %arg12[%c0_14, %c0_15] : memref<56x128xf32, #tpu.memory_space<vmem>>, vector<24x128xf32>
    %cst_16 = arith.constant dense<0.000000e+00> : vector<16x128xf32>
    %14 = tpu.matmul %12, %13, %cst_16 {dimension_numbers = #tpu.dot_dimension_numbers<[1], [0], [0], [1], [0, 0, 1, 1], [], []>} : vector<16x24xf32>, vector<24x128xf32>, vector<16x128xf32> -> vector<16x128xf32>
    %c0_17 = arith.constant 0 : index
    %c0_18 = arith.constant 0 : index
    %15 = vector.load %arg6[%c0_17, %c0_18] : memref<16x1xf32, #tpu.memory_space<vmem>>, vector<16x1xf32>
    %16 = vector.broadcast %15 : vector<16x1xf32> to vector<16x128xf32>
    %17 = arith.addf %14, %16 : vector<16x128xf32>
    %cst_19 = arith.constant 0.000000e+00 : f32
    %18 = vector.broadcast %cst_19 : f32 to vector<16x128xf32>
    %19 = arith.maximumf %17, %18 : vector<16x128xf32>
    %c24 = arith.constant 24 : index
    %c0_20 = arith.constant 0 : index
    %20 = vector.load %arg12[%c24, %c0_20] : memref<56x128xf32, #tpu.memory_space<vmem>>, vector<16x128xf32>
    tpu.vector_store %arg12[%c24, %c0_20], %19 {strides = array<i32>} : memref<56x128xf32, #tpu.memory_space<vmem>>, vector<16x128xf32>,
    %c0_21 = arith.constant 0 : index
    %c0_22 = arith.constant 0 : index
    %21 = vector.load %arg7[%c0_21, %c0_22] : memref<16x40xf32, #tpu.memory_space<vmem>>, vector<16x40xf32>
    %c0_23 = arith.constant 0 : index
    %c0_24 = arith.constant 0 : index
    %22 = vector.load %arg12[%c0_23, %c0_24] : memref<56x128xf32, #tpu.memory_space<vmem>>, vector<40x128xf32>
    %cst_25 = arith.constant dense<0.000000e+00> : vector<16x128xf32>
    %23 = tpu.matmul %21, %22, %cst_25 {dimension_numbers = #tpu.dot_dimension_numbers<[1], [0], [0], [1], [0, 0, 1, 1], [], []>} : vector<16x40xf32>, vector<40x128xf32>, vector<16x128xf32> -> vector<16x128xf32>
    %c0_26 = arith.constant 0 : index
    %c0_27 = arith.constant 0 : index
    %24 = vector.load %arg8[%c0_26, %c0_27] : memref<16x1xf32, #tpu.memory_space<vmem>>, vector<16x1xf32>
    %25 = vector.broadcast %24 : vector<16x1xf32> to vector<16x128xf32>
    %26 = arith.addf %23, %25 : vector<16x128xf32>
    %cst_28 = arith.constant 0.000000e+00 : f32
    %27 = vector.broadcast %cst_28 : f32 to vector<16x128xf32>
    %28 = arith.maximumf %26, %27 : vector<16x128xf32>
    %c40 = arith.constant 40 : index
    %c0_29 = arith.constant 0 : index
    %29 = vector.load %arg12[%c40, %c0_29] : memref<56x128xf32, #tpu.memory_space<vmem>>, vector<16x128xf32>
    tpu.vector_store %arg12[%c40, %c0_29], %28 {strides = array<i32>} : memref<56x128xf32, #tpu.memory_space<vmem>>, vector<16x128xf32>,
    %c0_30 = arith.constant 0 : index
    %c0_31 = arith.constant 0 : index
    %30 = vector.load %arg9[%c0_30, %c0_31] : memref<32x56xf32, #tpu.memory_space<vmem>>, vector<32x56xf32>
    %c0_32 = arith.constant 0 : index
    %c0_33 = arith.constant 0 : index
    %31 = vector.load %arg12[%c0_32, %c0_33] : memref<56x128xf32, #tpu.memory_space<vmem>>, vector<56x128xf32>
    %cst_34 = arith.constant dense<0.000000e+00> : vector<32x128xf32>
    %32 = tpu.matmul %30, %31, %cst_34 {dimension_numbers = #tpu.dot_dimension_numbers<[1], [0], [0], [1], [0, 0, 1, 1], [], []>} : vector<32x56xf32>, vector<56x128xf32>, vector<32x128xf32> -> vector<32x128xf32>
    %c0_35 = arith.constant 0 : index
    %c0_36 = arith.constant 0 : index
    %33 = vector.load %arg10[%c0_35, %c0_36] : memref<32x1xf32, #tpu.memory_space<vmem>>, vector<32x1xf32>
    %34 = vector.broadcast %33 : vector<32x1xf32> to vector<32x128xf32>
    %35 = arith.addf %32, %34 : vector<32x128xf32>
    %cst_37 = arith.constant 0.000000e+00 : f32
    %36 = vector.broadcast %cst_37 : f32 to vector<32x128xf32>
    %37 = arith.maximumf %35, %36 : vector<32x128xf32>
    %c0_38 = arith.constant 0 : index
    %c0_39 = arith.constant 0 : index
    %c0_40 = arith.constant 0 : index
    %38 = vector.load %arg11[%c0_38, %c0_39, %c0_40] : memref<1x32x128xf32, #tpu.memory_space<vmem>>, vector<1x32x128xf32>
    %39 = vector.shape_cast %38 : vector<1x32x128xf32> to vector<32x128xf32>
    %40 = vector.shape_cast %37 : vector<32x128xf32> to vector<1x32x128xf32>
    tpu.vector_store %arg11[%c0_38, %c0_39, %c0_40], %40 {strides = array<i32>} : memref<1x32x128xf32, #tpu.memory_space<vmem>>, vector<1x32x128xf32>,
    return
  }
  func.func @transform_0(%arg0: i32, %arg1: i32) -> (i32, i32, i32) {
    %c0_i32 = arith.constant 0 : i32
    %c0_i32_0 = arith.constant 0 : i32
    return %arg0, %c0_i32, %arg1 : i32, i32, i32
  }
  func.func @transform_1(%arg0: i32, %arg1: i32) -> (i32, i32) {
    %c0_i32 = arith.constant 0 : i32
    %c0_i32_0 = arith.constant 0 : i32
    %c0_i32_1 = arith.constant 0 : i32
    return %c0_i32, %c0_i32_0 : i32, i32
  }
  func.func @transform_2(%arg0: i32, %arg1: i32) -> (i32, i32) {
    %c0_i32 = arith.constant 0 : i32
    %c0_i32_0 = arith.constant 0 : i32
    %c0_i32_1 = arith.constant 0 : i32
    return %c0_i32, %c0_i32_0 : i32, i32
  }
  func.func @transform_3(%arg0: i32, %arg1: i32) -> (i32, i32) {
    %c0_i32 = arith.constant 0 : i32
    %c0_i32_0 = arith.constant 0 : i32
    %c0_i32_1 = arith.constant 0 : i32
    return %c0_i32, %c0_i32_0 : i32, i32
  }
  func.func @transform_4(%arg0: i32, %arg1: i32) -> (i32, i32) {
    %c0_i32 = arith.constant 0 : i32
    %c0_i32_0 = arith.constant 0 : i32
    %c0_i32_1 = arith.constant 0 : i32
    return %c0_i32, %c0_i32_0 : i32, i32
  }
  func.func @transform_5(%arg0: i32, %arg1: i32) -> (i32, i32) {
    %c0_i32 = arith.constant 0 : i32
    %c0_i32_0 = arith.constant 0 : i32
    %c0_i32_1 = arith.constant 0 : i32
    return %c0_i32, %c0_i32_0 : i32, i32
  }
  func.func @transform_6(%arg0: i32, %arg1: i32) -> (i32, i32) {
    %c0_i32 = arith.constant 0 : i32
    %c0_i32_0 = arith.constant 0 : i32
    %c0_i32_1 = arith.constant 0 : i32
    return %c0_i32, %c0_i32_0 : i32, i32
  }
  func.func @transform_7(%arg0: i32, %arg1: i32) -> (i32, i32) {
    %c0_i32 = arith.constant 0 : i32
    %c0_i32_0 = arith.constant 0 : i32
    %c0_i32_1 = arith.constant 0 : i32
    return %c0_i32, %c0_i32_0 : i32, i32
  }
  func.func @transform_8(%arg0: i32, %arg1: i32) -> (i32, i32) {
    %c0_i32 = arith.constant 0 : i32
    %c0_i32_0 = arith.constant 0 : i32
    %c0_i32_1 = arith.constant 0 : i32
    return %c0_i32, %c0_i32_0 : i32, i32
  }
  func.func @transform_9(%arg0: i32, %arg1: i32) -> (i32, i32, i32) {
    %c0_i32 = arith.constant 0 : i32
    %c0_i32_0 = arith.constant 0 : i32
    return %arg0, %c0_i32, %arg1 : i32, i32, i32
  }
}

</mosaic_0001>

<llo_original>
// kernel: dense_net_2d.1
$region0: #{dense_net_2d.1}
  #allocation0 [shape = 'u32[]', space=smem, size = 0x4, offset = 0x4, fixed_abs, tag = 'smem constant byte address 0x4 - core index']
  #allocation1 [shape = 'u32[144,128]{1,0:T(1,128)}', space=vmem, size = 0x12000, scoped, tag = 'internal scratch']
  #allocation2 [shape = 'f32[56,128]{1,0:T(8,128)}', space=vmem, size = 0x7000, scoped, tag = 'scratch operand']
  %s0 = inlined_call_operand.vmem [shape: f32[2,8,128], index: 0, kind: input, shape index: {}]
  %s1 = inlined_call_operand.vmem [shape: f32[16,8], index: 1, kind: input, shape index: {}]
  %s2 = inlined_call_operand.vmem [shape: f32[16,1], index: 2, kind: input, shape index: {}]
  %s3 = inlined_call_operand.vmem [shape: f32[16,24], index: 3, kind: input, shape index: {}]
  %s4 = inlined_call_operand.vmem [shape: f32[16,1], index: 4, kind: input, shape index: {}]
  %s5 = inlined_call_operand.vmem [shape: f32[16,40], index: 5, kind: input, shape index: {}]
  %s6 = inlined_call_operand.vmem [shape: f32[16,1], index: 6, kind: input, shape index: {}]
  %s7 = inlined_call_operand.vmem [shape: f32[32,56], index: 7, kind: input, shape index: {}]
  %s8 = inlined_call_operand.vmem [shape: f32[32,1], index: 8, kind: input, shape index: {}]
  %s9 = inlined_call_operand.vmem [shape: f32[2,32,128], index: 9, kind: output, shape index: {}]
  %s10 = sld [smem:[#allocation0]]
  $region69: #{dense_net_2d.1} parent=0
    _
  %s12 = ssub.s32 1, %s10
  %s13 = scalar_select 0, %s12, %s10
  loop: start=0, step=1, limit=4
  $region2: #{dense_net_2d.1} parent=0 // loop_pre_header
    _
  $region3: #{dense_net_2d.1} parent=0 // loop_header
    %s15 = sphi 0, %s19
    %p16 = scmp.ge.s32.totalorder %s15, 4
    %s22 = sphi 0, %s34
    %s23 = sphi 0, %s30
    %s24 = sphi 0, %s22
    %s25 = sphi 0, %s23
    %s26 = sphi 0, %s24
    %s27 = sphi 0, %s25
    %s39 = sphi 0, %s41
    %s42 = sphi 0, %s39
    %s43 = sphi 0, %s42
    %s59 = sphi 0, %s43
    %s63 = sphi 0, %s63
    %s65 = sphi 0, %s63
    %s66 = sphi 0, %s65
    %s80 = sphi 0, %s66
    %s84 = sphi 0, %s84
    %s86 = sphi 0, %s84
    %s87 = sphi 0, %s86
    %s101 = sphi 0, %s87
    %s105 = sphi 0, %s105
    %s107 = sphi 0, %s105
    %s108 = sphi 0, %s107
    %s122 = sphi 0, %s108
    %s126 = sphi 0, %s126
    %s128 = sphi 0, %s126
    %s129 = sphi 0, %s128
    %s143 = sphi 0, %s129
    %s147 = sphi 0, %s147
    %s149 = sphi 0, %s147
    %s150 = sphi 0, %s149
    %s164 = sphi 0, %s150
    %s168 = sphi 0, %s168
    %s170 = sphi 0, %s168
    %s171 = sphi 0, %s170
    %s185 = sphi 0, %s171
    %s189 = sphi 0, %s189
    %s191 = sphi 0, %s189
    %s192 = sphi 0, %s191
    %s206 = sphi 0, %s192
    %s210 = sphi 0, %s210
    %s212 = sphi 0, %s210
    %s213 = sphi 0, %s212
    %s227 = sphi 0, %s213
    %s235 = sphi 0, %s237
    %s238 = sphi 0, %s235
    %s239 = sphi 0, %s238
    %s255 = sphi 0, %s239
  $region4: #{dense_net_2d.1} parent=0 // loop_header_branch
    %18 = sbr.rel (%p16) target = $region8
  $region5: #{dense_net_2d.1} parent=0 // loop_body
    %s20 = ssub.s32 %s15, 1
    %s21 = ssub.s32 %s15, 2
    %s28 = sadd.s32 1, %s23
    %p29 = scmp.ge.s32.totalorder %s28, 1
    %s30 = scalar_select %p29, 0, %s28
    %s31 = sadd.s32 1, %s22
    %s32 = scalar_select %p29, %s31, %s22
    %p33 = scmp.ge.s32.totalorder %s32, 2
    %s34 = scalar_select %p33, 0, %s32
    %s35 = ssub.s32 %s22, %s34
    %s36 = ssub.s32 %s23, %s30
    %s37 = sor.u32 %s35, %s36
    %p38 = scmp.eq.s32.totalorder %s37, 0
    %s40 = sadd.s32 %s39, 1
    %s41 = scalar_select %p38, %s39, %s40
    %p44 = pneg %p38
    %p45 = scmp.eq.s32.totalorder %s15, 1
    %p46 = por %p44, %p45
    %p47 = scmp.ne.s32.totalorder %s39, %s42
    %p48 = scmp.eq.s32.totalorder %s15, 0
    %p49 = por %p47, %p48
    %p50 = scmp.ne.s32.totalorder %s39, %s42
    %p51 = scmp.eq.s32.totalorder %s20, 1
    %p52 = por %p50, %p51
    %p53 = scmp.ne.s32.totalorder %s42, %s43
    %p54 = scmp.eq.s32.totalorder %s20, 0
    %p55 = por %p53, %p54
    %p56 = scmp.ne.s32.totalorder %s42, %s43
    %p57 = scmp.eq.s32.totalorder %s21, 1
    %p58 = por %p56, %p57
    %p60 = scmp.ne.s32.totalorder %s43, %s59
    %p61 = scmp.eq.s32.totalorder %s21, 0
    %p62 = por %p60, %p61
    %s64 = sadd.s32 %s63, 1
    %p67 = scmp.eq.s32.totalorder %s15, 1
    %p68 = scmp.ne.s32.totalorder %s63, %s65
    %p69 = scmp.eq.s32.totalorder %s15, 0
    %p70 = por %p68, %p69
    %p71 = scmp.ne.s32.totalorder %s63, %s65
    %p72 = scmp.eq.s32.totalorder %s20, 1
    %p73 = por %p71, %p72
    %p74 = scmp.ne.s32.totalorder %s65, %s66
    %p75 = scmp.eq.s32.totalorder %s20, 0
    %p76 = por %p74, %p75
    %p77 = scmp.ne.s32.totalorder %s65, %s66
    %p78 = scmp.eq.s32.totalorder %s21, 1
    %p79 = por %p77, %p78
    %p81 = scmp.ne.s32.totalorder %s66, %s80
    %p82 = scmp.eq.s32.totalorder %s21, 0
    %p83 = por %p81, %p82
    %s85 = sadd.s32 %s84, 1
    %p88 = scmp.eq.s32.totalorder %s15, 1
    %p89 = scmp.ne.s32.totalorder %s84, %s86
    %p90 = scmp.eq.s32.totalorder %s15, 0
    %p91 = por %p89, %p90
    %p92 = scmp.ne.s32.totalorder %s84, %s86
    %p93 = scmp.eq.s32.totalorder %s20, 1
    %p94 = por %p92, %p93
    %p95 = scmp.ne.s32.totalorder %s86, %s87
    %p96 = scmp.eq.s32.totalorder %s20, 0
    %p97 = por %p95, %p96
    %p98 = scmp.ne.s32.totalorder %s86, %s87
    %p99 = scmp.eq.s32.totalorder %s21, 1
    %p100 = por %p98, %p99
    %p102 = scmp.ne.s32.totalorder %s87, %s101
    %p103 = scmp.eq.s32.totalorder %s21, 0
    %p104 = por %p102, %p103
    %s106 = sadd.s32 %s105, 1
    %p109 = scmp.eq.s32.totalorder %s15, 1
    %p110 = scmp.ne.s32.totalorder %s105, %s107
    %p111 = scmp.eq.s32.totalorder %s15, 0
    %p112 = por %p110, %p111
    %p113 = scmp.ne.s32.totalorder %s105, %s107
    %p114 = scmp.eq.s32.totalorder %s20, 1
    %p115 = por %p113, %p114
    %p116 = scmp.ne.s32.totalorder %s107, %s108
    %p117 = scmp.eq.s32.totalorder %s20, 0
    %p118 = por %p116, %p117
    %p119 = scmp.ne.s32.totalorder %s107, %s108
    %p120 = scmp.eq.s32.totalorder %s21, 1
    %p121 = por %p119, %p120
    %p123 = scmp.ne.s32.totalorder %s108, %s122
    %p124 = scmp.eq.s32.totalorder %s21, 0
    %p125 = por %p123, %p124
    %s127 = sadd.s32 %s126, 1
    %p130 = scmp.eq.s32.totalorder %s15, 1
    %p131 = scmp.ne.s32.totalorder %s126, %s128
    %p132 = scmp.eq.s32.totalorder %s15, 0
    %p133 = por %p131, %p132
    %p134 = scmp.ne.s32.totalorder %s126, %s128
    %p135 = scmp.eq.s32.totalorder %s20, 1
    %p136 = por %p134, %p135
    %p137 = scmp.ne.s32.totalorder %s128, %s129
    %p138 = scmp.eq.s32.totalorder %s20, 0
    %p139 = por %p137, %p138
    %p140 = scmp.ne.s32.totalorder %s128, %s129
    %p141 = scmp.eq.s32.totalorder %s21, 1
    %p142 = por %p140, %p141
    %p144 = scmp.ne.s32.totalorder %s129, %s143
    %p145 = scmp.eq.s32.totalorder %s21, 0
    %p146 = por %p144, %p145
    %s148 = sadd.s32 %s147, 1
    %p151 = scmp.eq.s32.totalorder %s15, 1
    %p152 = scmp.ne.s32.totalorder %s147, %s149
    %p153 = scmp.eq.s32.totalorder %s15, 0
    %p154 = por %p152, %p153
    %p155 = scmp.ne.s32.totalorder %s147, %s149
    %p156 = scmp.eq.s32.totalorder %s20, 1
    %p157 = por %p155, %p156
    %p158 = scmp.ne.s32.totalorder %s149, %s150
    %p159 = scmp.eq.s32.totalorder %s20, 0
    %p160 = por %p158, %p159
    %p161 = scmp.ne.s32.totalorder %s149, %s150
    %p162 = scmp.eq.s32.totalorder %s21, 1
    %p163 = por %p161, %p162
    %p165 = scmp.ne.s32.totalorder %s150, %s164
    %p166 = scmp.eq.s32.totalorder %s21, 0
    %p167 = por %p165, %p166
    %s169 = sadd.s32 %s168, 1
    %p172 = scmp.eq.s32.totalorder %s15, 1
    %p173 = scmp.ne.s32.totalorder %s168, %s170
    %p174 = scmp.eq.s32.totalorder %s15, 0
    %p175 = por %p173, %p174
    %p176 = scmp.ne.s32.totalorder %s168, %s170
    %p177 = scmp.eq.s32.totalorder %s20, 1
    %p178 = por %p176, %p177
    %p179 = scmp.ne.s32.totalorder %s170, %s171
    %p180 = scmp.eq.s32.totalorder %s20, 0
    %p181 = por %p179, %p180
    %p182 = scmp.ne.s32.totalorder %s170, %s171
    %p183 = scmp.eq.s32.totalorder %s21, 1
    %p184 = por %p182, %p183
    %p186 = scmp.ne.s32.totalorder %s171, %s185
    %p187 = scmp.eq.s32.totalorder %s21, 0
    %p188 = por %p186, %p187
    %s190 = sadd.s32 %s189, 1
    %p193 = scmp.eq.s32.totalorder %s15, 1
    %p194 = scmp.ne.s32.totalorder %s189, %s191
    %p195 = scmp.eq.s32.totalorder %s15, 0
    %p196 = por %p194, %p195
    %p197 = scmp.ne.s32.totalorder %s189, %s191
    %p198 = scmp.eq.s32.totalorder %s20, 1
    %p199 = por %p197, %p198
    %p200 = scmp.ne.s32.totalorder %s191, %s192
    %p201 = scmp.eq.s32.totalorder %s20, 0
    %p202 = por %p200, %p201
    %p203 = scmp.ne.s32.totalorder %s191, %s192
    %p204 = scmp.eq.s32.totalorder %s21, 1
    %p205 = por %p203, %p204
    %p207 = scmp.ne.s32.totalorder %s192, %s206
    %p208 = scmp.eq.s32.totalorder %s21, 0
    %p209 = por %p207, %p208
    %s211 = sadd.s32 %s210, 1
    %p214 = scmp.eq.s32.totalorder %s15, 1
    %p215 = scmp.ne.s32.totalorder %s210, %s212
    %p216 = scmp.eq.s32.totalorder %s15, 0
    %p217 = por %p215, %p216
    %p218 = scmp.ne.s32.totalorder %s210, %s212
    %p219 = scmp.eq.s32.totalorder %s20, 1
    %p220 = por %p218, %p219
    %p221 = scmp.ne.s32.totalorder %s212, %s213
    %p222 = scmp.eq.s32.totalorder %s20, 0
    %p223 = por %p221, %p222
    %p224 = scmp.ne.s32.totalorder %s212, %s213
    %p225 = scmp.eq.s32.totalorder %s21, 1
    %p226 = por %p224, %p225
    %p228 = scmp.ne.s32.totalorder %s213, %s227
    %p229 = scmp.eq.s32.totalorder %s21, 0
    %p230 = por %p228, %p229
    %s231 = ssub.s32 %s22, %s34
    %s232 = ssub.s32 %s23, %s30
    %s233 = sor.u32 %s231, %s232
    %p234 = scmp.eq.s32.totalorder %s233, 0
    %s236 = sadd.s32 %s235, 1
    %s237 = scalar_select %p234, %s235, %s236
    %p240 = pneg %p234
    %p241 = scmp.eq.s32.totalorder %s15, 1
    %p242 = por %p240, %p241
    %p243 = scmp.ne.s32.totalorder %s235, %s238
    %p244 = scmp.eq.s32.totalorder %s15, 0
    %p245 = por %p243, %p244
    %p246 = scmp.ne.s32.totalorder %s235, %s238
    %p247 = scmp.eq.s32.totalorder %s20, 1
    %p248 = por %p246, %p247
    %p249 = scmp.ne.s32.totalorder %s238, %s239
    %p250 = scmp.eq.s32.totalorder %s20, 0
    %p251 = por %p249, %p250
    %p252 = scmp.ne.s32.totalorder %s238, %s239
    %p253 = scmp.eq.s32.totalorder %s21, 1
    %p254 = por %p252, %p253
    %p256 = scmp.ne.s32.totalorder %s239, %s255
    %p257 = scmp.eq.s32.totalorder %s21, 0
    %p258 = por %p256, %p257
    %p259 = scmp.le.s32.totalorder 1, %s15
    %p260 = scmp.lt.s32.totalorder %s15, 3
    %p261 = pnand %p259, %p260
    %p262 = pneg %p261
    // Predicated region
    $region9: #{dense_net_2d.1} parent=5 // pred_check
      _
    $region10: #{dense_net_2d.1} parent=5 // pred_check_branch
      %264 = sbr.rel (%p261) target = $region12
    $region11: #{dense_net_2d.1} parent=5 // pred_region
      %s265 = ssub.s32 %s15, 1
      // Predicated region
      $region13: #{dense_net_2d.1} parent=11 // pred_check
        %p266 = pneg %p76
      $region14: #{dense_net_2d.1} parent=11 // pred_check_branch
        %268 = sbr.rel (%p266) target = $region16
      $region15: #{dense_net_2d.1} parent=11 // pred_region
        _
      $region16: #{dense_net_2d.1} parent=11 // pred_fallthru
        _
      // Predicated region
      $region17: #{dense_net_2d.1} parent=11 // pred_check
        %p269 = pneg %p97
      $region18: #{dense_net_2d.1} parent=11 // pred_check_branch
        %271 = sbr.rel (%p269) target = $region20
      $region19: #{dense_net_2d.1} parent=11 // pred_region
        _
      $region20: #{dense_net_2d.1} parent=11 // pred_fallthru
        _
      // Predicated region
      $region21: #{dense_net_2d.1} parent=11 // pred_check
        %p272 = pneg %p118
      $region22: #{dense_net_2d.1} parent=11 // pred_check_branch
        %274 = sbr.rel (%p272) target = $region24
      $region23: #{dense_net_2d.1} parent=11 // pred_region
        _
      $region24: #{dense_net_2d.1} parent=11 // pred_fallthru
        _
      // Predicated region
      $region25: #{dense_net_2d.1} parent=11 // pred_check
        %p275 = pneg %p139
      $region26: #{dense_net_2d.1} parent=11 // pred_check_branch
        %277 = sbr.rel (%p275) target = $region28
      $region27: #{dense_net_2d.1} parent=11 // pred_region
        _
      $region28: #{dense_net_2d.1} parent=11 // pred_fallthru
        _
      // Predicated region
      $region29: #{dense_net_2d.1} parent=11 // pred_check
        %p278 = pneg %p160
      $region30: #{dense_net_2d.1} parent=11 // pred_check_branch
        %280 = sbr.rel (%p278) target = $region32
      $region31: #{dense_net_2d.1} parent=11 // pred_region
        _
      $region32: #{dense_net_2d.1} parent=11 // pred_fallthru
        _
      // Predicated region
      $region33: #{dense_net_2d.1} parent=11 // pred_check
        %p281 = pneg %p181
      $region34: #{dense_net_2d.1} parent=11 // pred_check_branch
        %283 = sbr.rel (%p281) target = $region36
      $region35: #{dense_net_2d.1} parent=11 // pred_region
        _
      $region36: #{dense_net_2d.1} parent=11 // pred_fallthru
        _
      // Predicated region
      $region37: #{dense_net_2d.1} parent=11 // pred_check
        %p284 = pneg %p202
      $region38: #{dense_net_2d.1} parent=11 // pred_check_branch
        %286 = sbr.rel (%p284) target = $region40
      $region39: #{dense_net_2d.1} parent=11 // pred_region
        _
      $region40: #{dense_net_2d.1} parent=11 // pred_fallthru
        _
      // Predicated region
      $region41: #{dense_net_2d.1} parent=11 // pred_check
        %p287 = pneg %p223
      $region42: #{dense_net_2d.1} parent=11 // pred_check_branch
        %289 = sbr.rel (%p287) target = $region44
      $region43: #{dense_net_2d.1} parent=11 // pred_region
        _
      $region44: #{dense_net_2d.1} parent=11 // pred_fallthru
        _
    $region12: #{dense_net_2d.1} parent=5 // pred_fallthru
      _
    %p290 = scmp.lt.s32.totalorder %s15, 2
    // Predicated region
    $region45: #{dense_net_2d.1} parent=5 // pred_check
      %p291 = pneg %p290
    $region46: #{dense_net_2d.1} parent=5 // pred_check_branch
      %293 = sbr.rel (%p291) target = $region48
    $region47: #{dense_net_2d.1} parent=5 // pred_region
      // Predicated region
      $region49: #{dense_net_2d.1} parent=47 // pred_check
        %p294 = pneg %p49
      $region50: #{dense_net_2d.1} parent=47 // pred_check_branch
        %296 = sbr.rel (%p294) target = $region52
      $region51: #{dense_net_2d.1} parent=47 // pred_region
        %p297 = scmp.lt.s32.totalorder %s22, 1
        %s298 = scalar_select %p297, %s22, 1
        %p299 = scmp.lt.s32.totalorder %s23, 0
        %s300 = scalar_select %p299, %s23, 0
        %s301 = sadd.s32 %s300, %s298
        %s302 = smul.addr %s301, 8
        %s303 = scalar_lea.vmem %s0, %s302
      $region52: #{dense_net_2d.1} parent=47 // pred_fallthru
        _
    $region48: #{dense_net_2d.1} parent=5 // pred_fallthru
      _
    %p304 = scmp.le.s32.totalorder 1, %s15
    %p305 = scmp.lt.s32.totalorder %s15, 3
    %p306 = pnand %p304, %p305
    %p307 = pneg %p306
    // Predicated region
    $region53: #{dense_net_2d.1} parent=5 // pred_check
      _
    $region54: #{dense_net_2d.1} parent=5 // pred_check_branch
      %309 = sbr.rel (%p306) target = $region56
    $region55: #{dense_net_2d.1} parent=5 // pred_region
      %s310 = ssub.s32 %s15, 1
      %p311 = scmp.lt.s32.totalorder %s24, 1
      %s312 = scalar_select %p311, %s24, 1
      %p313 = scmp.lt.s32.totalorder %s25, 0
      %s314 = scalar_select %p313, %s25, 0
      %s315 = sadd.s32 %s314, %s312
      %s316 = smul.addr %s315, 8
      %s317 = scalar_lea.vmem %s0, %s316
      %p318 = pneg %p55
      %p319 = pneg %p52
      %p320 = pneg %p76
      %p321 = pneg %p73
      %p322 = pneg %p97
      %p323 = pneg %p94
      %p324 = pneg %p118
      %p325 = pneg %p115
      %p326 = pneg %p139
      %p327 = pneg %p136
      %p328 = pneg %p160
      %p329 = pneg %p157
      %p330 = pneg %p181
      %p331 = pneg %p178
      %p332 = pneg %p202
      %p333 = pneg %p199
      %p334 = pneg %p223
      %p335 = pneg %p220
      %p336 = pneg %p251
      %p337 = pneg %p248
      %p338 = scmp.lt.s32.totalorder %s24, 1
      %s339 = scalar_select %p338, %s24, 1
      %p340 = scmp.lt.s32.totalorder %s25, 0
      %s341 = scalar_select %p340, %s25, 0
      %s342 = smul.addr %s339, 4
      %s343 = sadd.s32 %s341, %s342
      %s344 = smul.addr %s343, 8
      %s345 = scalar_lea.vmem %s9, %s344
      %p346 = scmp.lt.s32.totalorder %s24, 1
      %s347 = scalar_select %p346, %s24, 1
      %p348 = scmp.lt.s32.totalorder %s25, 0
      %s349 = scalar_select %p348, %s25, 0
      %s350 = sadd.s32 %s349, %s347
      %s351 = smul.addr %s350, 8
      %s352 = scalar_lea.vmem %s0, %s351
      %p353 = scmp.lt.s32.totalorder %s24, 1
      %s354 = scalar_select %p353, %s24, 1
      %p355 = scmp.lt.s32.totalorder %s25, 0
      %s356 = scalar_select %p355, %s25, 0
      %s357 = smul.addr %s354, 4
      %s358 = sadd.s32 %s356, %s357
      %s359 = smul.addr %s358, 8
      %s360 = scalar_lea.vmem %s9, %s359
      %v361 = vld [vmem:[%s352] sm:$0xff]
      %362 = vst [vmem:[#allocation2] sm:$0xff] %v361
      %v363 = vld [vmem:[%s1] sm:$0xff]
      %v364 = vld [vmem:[%s1 + $0x8] sm:$0xff]
      %v365 = vld [vmem:[#allocation2] sm:$0xff]
      %v366 = vld [vmem:[%s2] sm:$0xff]
      %v367 = vld [vmem:[%s2 + $0x8] sm:$0xff]
      %369 = vset.pattern.permute.xlu0 0
      %370 = vperm.xlu0 %369, %v366
      %v371 = vpop.permute.xlu0 %370
      %374 = vset.pattern.permute.xlu0 0
      %375 = vperm.xlu0 %374, %v367
      %v376 = vpop.permute.xlu0 %375
      %vm378 = vcmask 64512
      %v380 = vsel %vm378, %v363, 0
      %v383 = vsel %vm378, %v364, 0
      %385 = vmatprep.subr.mxu0 0.0
      %386 = vmatpush1.msra.mxu0 0.0
      %387 = vmatprep.subr.mxu0 0.0
      %388 = vmatpush1.msra.mxu0 0.0
      %389 = vmatprep.subr.mxu0 0.0
      %390 = vmatpush1.msra.mxu0 0.0
      %391 = vmatprep.subr.mxu0 0.0
      %392 = vmatpush1.msra.mxu0 0.0
      %393 = vmatprep.subr.mxu0 0.0
      %394 = vmatpush1.msra.mxu0 0.0
      %395 = vmatprep.subr.mxu0 0.0
      %396 = vmatpush1.msra.mxu0 0.0
      %397 = vmatprep.subr.mxu0 0.0
      %398 = vmatpush1.msra.mxu0 0.0
      %399 = vmatprep.subr.mxu0 0.0
      %400 = vmatpush1.msra.mxu0 0.0
      %401 = vmatprep.subr.mxu0 0.0
      %402 = vmatpush1.msra.mxu0 0.0
      %403 = vmatprep.subr.mxu0 0.0
      %404 = vmatpush1.msra.mxu0 0.0
      %405 = vmatprep.subr.mxu0 0.0
      %406 = vmatpush1.msra.mxu0 0.0
      %407 = vmatprep.subr.mxu0 0.0
      %408 = vmatpush1.msra.mxu0 0.0
      %409 = vmatprep.subr.mxu0 0.0
      %410 = vmatpush1.msra.mxu0 0.0
      %411 = vmatprep.subr.mxu0 0.0
      %412 = vmatpush1.msra.mxu0 0.0
      %413 = vmatprep.subr.mxu0 0.0
      %414 = vmatpush1.msra.mxu0 0.0
      %415 = vmatprep.subr.mxu0 0.0
      %416 = vmatpush1.msra.mxu0 %v365
      %417 = vmatprep.subr.mxu0 0.0
      %418 = vmatpush2.msra.mxu0 0.0
      %419 = vmatprep.subr.mxu0 0.0
      %420 = vmatpush2.msra.mxu0 0.0
      %421 = vmatprep.subr.mxu0 0.0
      %422 = vmatpush2.msra.mxu0 0.0
      %423 = vmatprep.subr.mxu0 0.0
      %424 = vmatpush2.msra.mxu0 0.0
      %425 = vmatprep.subr.mxu0 0.0
      %426 = vmatpush2.msra.mxu0 0.0
      %427 = vmatprep.subr.mxu0 0.0
      %428 = vmatpush2.msra.mxu0 0.0
      %429 = vmatprep.subr.mxu0 0.0
      %430 = vmatpush2.msra.mxu0 0.0
      %431 = vmatprep.subr.mxu0 0.0
      %432 = vmatpush2.msra.mxu0 0.0
      %433 = vmatprep.subr.mxu0 0.0
      %434 = vmatpush2.msra.mxu0 0.0
      %435 = vmatprep.subr.mxu0 0.0
      %436 = vmatpush2.msra.mxu0 0.0
      %437 = vmatprep.subr.mxu0 0.0
      %438 = vmatpush2.msra.mxu0 0.0
      %439 = vmatprep.subr.mxu0 0.0
      %440 = vmatpush2.msra.mxu0 0.0
      %441 = vmatprep.subr.mxu0 0.0
      %442 = vmatpush2.msra.mxu0 0.0
      %443 = vmatprep.subr.mxu0 0.0
      %444 = vmatpush2.msra.mxu0 0.0
      %445 = vmatprep.subr.mxu0 0.0
      %446 = vmatpush2.msra.mxu0 0.0
      %447 = vmatprep.subr.mxu0 0.0
      %448 = vmatpush2.msra.mxu0 0.0
      %449 = vmatprep.mubr.f32.mxu0 0.0
      %450 = vmatmul.mubr.f32.gmra.mxu0 %v380
      %v451 = vpop.f32.mrf.mxu0
      %v452 = vadd.f32 %v371, %v451
      %v453 = vpop.f32.mrf.mxu0
      %454 = vmatprep.mubr.f32.mxu0 0.0
      %455 = vmatmul.mubr.f32.gmra.mxu0 %v383
      %v456 = vpop.f32.mrf.mxu0
      %v457 = vadd.f32 %v376, %v456
      %v458 = vpop.f32.mrf.mxu0
      %459 = vdwg.mxu0
      %v460 = vmax.f32 %v452, 0.0
      %v461 = vmax.f32 %v457, 0.0
      %462 = vst [vmem:[#allocation2 + $0x8] sm:$0xff] %v460
      %463 = vst [vmem:[#allocation2 + $0x10] sm:$0xff] %v461
      %v464 = vld [vmem:[%s3] sm:$0xff]
      %v465 = vld [vmem:[%s3 + $0x8] sm:$0xff]
      %v466 = vld [vmem:[#allocation2] sm:$0xff]
      %v467 = vld [vmem:[#allocation2 + $0x8] sm:$0xff]
      %v468 = vld [vmem:[#allocation2 + $0x10] sm:$0xff]
      %v469 = vld [vmem:[%s4] sm:$0xff]
      %v470 = vld [vmem:[%s4 + $0x8] sm:$0xff]
      %472 = vset.pattern.permute.xlu0 0
      %473 = vperm.xlu0 %472, %v469
      %v474 = vpop.permute.xlu0 %473
      %477 = vset.pattern.permute.xlu0 0
      %478 = vperm.xlu0 %477, %v470
      %v479 = vpop.permute.xlu0 %478
      %vm481 = vcmask 195584
      %v483 = vsel %vm481, %v464, 0
      %v486 = vsel %vm481, %v465, 0
      %488 = vmatprep.subr.mxu0 0.0
      %489 = vmatpush1.msra.mxu0 0.0
      %490 = vmatprep.subr.mxu0 0.0
      %491 = vmatpush1.msra.mxu0 0.0
      %492 = vmatprep.subr.mxu0 0.0
      %493 = vmatpush1.msra.mxu0 0.0
      %494 = vmatprep.subr.mxu0 0.0
      %495 = vmatpush1.msra.mxu0 0.0
      %496 = vmatprep.subr.mxu0 0.0
      %497 = vmatpush1.msra.mxu0 0.0
      %498 = vmatprep.subr.mxu0 0.0
      %499 = vmatpush1.msra.mxu0 0.0
      %500 = vmatprep.subr.mxu0 0.0
      %501 = vmatpush1.msra.mxu0 0.0
      %502 = vmatprep.subr.mxu0 0.0
      %503 = vmatpush1.msra.mxu0 0.0
      %504 = vmatprep.subr.mxu0 0.0
      %505 = vmatpush1.msra.mxu0 0.0
      %506 = vmatprep.subr.mxu0 0.0
      %507 = vmatpush1.msra.mxu0 0.0
      %508 = vmatprep.subr.mxu0 0.0
      %509 = vmatpush1.msra.mxu0 0.0
      %510 = vmatprep.subr.mxu0 0.0
      %511 = vmatpush1.msra.mxu0 0.0
      %512 = vmatprep.subr.mxu0 0.0
      %513 = vmatpush1.msra.mxu0 0.0
      %514 = vmatprep.subr.mxu0 0.0
      %515 = vmatpush1.msra.mxu0 %v468
      %516 = vmatprep.subr.mxu0 0.0
      %517 = vmatpush1.msra.mxu0 %v467
      %518 = vmatprep.subr.mxu0 0.0
      %519 = vmatpush1.msra.mxu0 %v466
      %520 = vmatprep.subr.mxu0 0.0
      %521 = vmatpush2.msra.mxu0 0.0
      %522 = vmatprep.subr.mxu0 0.0
      %523 = vmatpush2.msra.mxu0 0.0
      %524 = vmatprep.subr.mxu0 0.0
      %525 = vmatpush2.msra.mxu0 0.0
      %526 = vmatprep.subr.mxu0 0.0
      %527 = vmatpush2.msra.mxu0 0.0
      %528 = vmatprep.subr.mxu0 0.0
      %529 = vmatpush2.msra.mxu0 0.0
      %530 = vmatprep.subr.mxu0 0.0
      %531 = vmatpush2.msra.mxu0 0.0
      %532 = vmatprep.subr.mxu0 0.0
      %533 = vmatpush2.msra.mxu0 0.0
      %534 = vmatprep.subr.mxu0 0.0
      %535 = vmatpush2.msra.mxu0 0.0
      %536 = vmatprep.subr.mxu0 0.0
      %537 = vmatpush2.msra.mxu0 0.0
      %538 = vmatprep.subr.mxu0 0.0
      %539 = vmatpush2.msra.mxu0 0.0
      %540 = vmatprep.subr.mxu0 0.0
      %541 = vmatpush2.msra.mxu0 0.0
      %542 = vmatprep.subr.mxu0 0.0
      %543 = vmatpush2.msra.mxu0 0.0
      %544 = vmatprep.subr.mxu0 0.0
      %545 = vmatpush2.msra.mxu0 0.0
      %546 = vmatprep.subr.mxu0 0.0
      %547 = vmatpush2.msra.mxu0 0.0
      %548 = vmatprep.subr.mxu0 0.0
      %549 = vmatpush2.msra.mxu0 0.0
      %550 = vmatprep.subr.mxu0 0.0
      %551 = vmatpush2.msra.mxu0 0.0
      %552 = vmatprep.mubr.f32.mxu0 0.0
      %553 = vmatmul.mubr.f32.gmra.mxu0 %v483
      %v554 = vpop.f32.mrf.mxu0
      %v555 = vadd.f32 %v474, %v554
      %v556 = vpop.f32.mrf.mxu0
      %557 = vmatprep.mubr.f32.mxu0 0.0
      %558 = vmatmul.mubr.f32.gmra.mxu0 %v486
      %v559 = vpop.f32.mrf.mxu0
      %v560 = vadd.f32 %v479, %v559
      %v561 = vpop.f32.mrf.mxu0
      %562 = vdwg.mxu0
      %v563 = vmax.f32 %v555, 0.0
      %v564 = vmax.f32 %v560, 0.0
      %565 = vst [vmem:[#allocation2 + $0x18] sm:$0xff] %v563
      %566 = vst [vmem:[#allocation2 + $0x20] sm:$0xff] %v564
      %v567 = vld [vmem:[%s5] sm:$0xff]
      %v568 = vld [vmem:[%s5 + $0x8] sm:$0xff]
      %v569 = vld [vmem:[#allocation2] sm:$0xff]
      %v570 = vld [vmem:[#allocation2 + $0x8] sm:$0xff]
      %v571 = vld [vmem:[#allocation2 + $0x10] sm:$0xff]
      %v572 = vld [vmem:[#allocation2 + $0x18] sm:$0xff]
      %v573 = vld [vmem:[#allocation2 + $0x20] sm:$0xff]
      %v574 = vld [vmem:[%s6] sm:$0xff]
      %v575 = vld [vmem:[%s6 + $0x8] sm:$0xff]
      %577 = vset.pattern.permute.xlu0 0
      %578 = vperm.xlu0 %577, %v574
      %v579 = vpop.permute.xlu0 %578
      %582 = vset.pattern.permute.xlu0 0
      %583 = vperm.xlu0 %582, %v575
      %v584 = vpop.permute.xlu0 %583
      %vm586 = vcmask 326656
      %v588 = vsel %vm586, %v567, 0
      %v591 = vsel %vm586, %v568, 0
      %593 = vmatprep.subr.mxu0 0.0
      %594 = vmatpush1.msra.mxu0 0.0
      %595 = vmatprep.subr.mxu0 0.0
      %596 = vmatpush1.msra.mxu0 0.0
      %597 = vmatprep.subr.mxu0 0.0
      %598 = vmatpush1.msra.mxu0 0.0
      %599 = vmatprep.subr.mxu0 0.0
      %600 = vmatpush1.msra.mxu0 0.0
      %601 = vmatprep.subr.mxu0 0.0
      %602 = vmatpush1.msra.mxu0 0.0
      %603 = vmatprep.subr.mxu0 0.0
      %604 = vmatpush1.msra.mxu0 0.0
      %605 = vmatprep.subr.mxu0 0.0
      %606 = vmatpush1.msra.mxu0 0.0
      %607 = vmatprep.subr.mxu0 0.0
      %608 = vmatpush1.msra.mxu0 0.0
      %609 = vmatprep.subr.mxu0 0.0
      %610 = vmatpush1.msra.mxu0 0.0
      %611 = vmatprep.subr.mxu0 0.0
      %612 = vmatpush1.msra.mxu0 0.0
      %613 = vmatprep.subr.mxu0 0.0
      %614 = vmatpush1.msra.mxu0 0.0
      %615 = vmatprep.subr.mxu0 0.0
      %616 = vmatpush1.msra.mxu0 %v573
      %617 = vmatprep.subr.mxu0 0.0
      %618 = vmatpush1.msra.mxu0 %v572
      %619 = vmatprep.subr.mxu0 0.0
      %620 = vmatpush1.msra.mxu0 %v571
      %621 = vmatprep.subr.mxu0 0.0
      %622 = vmatpush1.msra.mxu0 %v570
      %623 = vmatprep.subr.mxu0 0.0
      %624 = vmatpush1.msra.mxu0 %v569
      %625 = vmatprep.subr.mxu0 0.0
      %626 = vmatpush2.msra.mxu0 0.0
      %627 = vmatprep.subr.mxu0 0.0
      %628 = vmatpush2.msra.mxu0 0.0
      %629 = vmatprep.subr.mxu0 0.0
      %630 = vmatpush2.msra.mxu0 0.0
      %631 = vmatprep.subr.mxu0 0.0
      %632 = vmatpush2.msra.mxu0 0.0
      %633 = vmatprep.subr.mxu0 0.0
      %634 = vmatpush2.msra.mxu0 0.0
      %635 = vmatprep.subr.mxu0 0.0
      %636 = vmatpush2.msra.mxu0 0.0
      %637 = vmatprep.subr.mxu0 0.0
      %638 = vmatpush2.msra.mxu0 0.0
      %639 = vmatprep.subr.mxu0 0.0
      %640 = vmatpush2.msra.mxu0 0.0
      %641 = vmatprep.subr.mxu0 0.0
      %642 = vmatpush2.msra.mxu0 0.0
      %643 = vmatprep.subr.mxu0 0.0
      %644 = vmatpush2.msra.mxu0 0.0
      %645 = vmatprep.subr.mxu0 0.0
      %646 = vmatpush2.msra.mxu0 0.0
      %647 = vmatprep.subr.mxu0 0.0
      %648 = vmatpush2.msra.mxu0 0.0
      %649 = vmatprep.subr.mxu0 0.0
      %650 = vmatpush2.msra.mxu0 0.0
      %651 = vmatprep.subr.mxu0 0.0
      %652 = vmatpush2.msra.mxu0 0.0
      %653 = vmatprep.subr.mxu0 0.0
      %654 = vmatpush2.msra.mxu0 0.0
      %655 = vmatprep.subr.mxu0 0.0
      %656 = vmatpush2.msra.mxu0 0.0
      %657 = vmatprep.mubr.f32.mxu0 0.0
      %658 = vmatmul.mubr.f32.gmra.mxu0 %v588
      %v659 = vpop.f32.mrf.mxu0
      %v660 = vadd.f32 %v579, %v659
      %v661 = vpop.f32.mrf.mxu0
      %662 = vmatprep.mubr.f32.mxu0 0.0
      %663 = vmatmul.mubr.f32.gmra.mxu0 %v591
      %v664 = vpop.f32.mrf.mxu0
      %v665 = vadd.f32 %v584, %v664
      %v666 = vpop.f32.mrf.mxu0
      %667 = vdwg.mxu0
      %v668 = vmax.f32 %v660, 0.0
      %v669 = vmax.f32 %v665, 0.0
      %670 = vst [vmem:[#allocation2 + $0x28] sm:$0xff] %v668
      %671 = vst [vmem:[#allocation2 + $0x30] sm:$0xff] %v669
      %v672 = vld [vmem:[%s7] sm:$0xff]
      %v673 = vld [vmem:[%s7 + $0x8] sm:$0xff]
      %v674 = vld [vmem:[%s7 + $0x10] sm:$0xff]
      %v675 = vld [vmem:[%s7 + $0x18] sm:$0xff]
      %v676 = vld [vmem:[#allocation2] sm:$0xff]
      %v677 = vld [vmem:[#allocation2 + $0x8] sm:$0xff]
      %v678 = vld [vmem:[#allocation2 + $0x10] sm:$0xff]
      %v679 = vld [vmem:[#allocation2 + $0x18] sm:$0xff]
      %v680 = vld [vmem:[#allocation2 + $0x20] sm:$0xff]
      %v681 = vld [vmem:[#allocation2 + $0x28] sm:$0xff]
      %v682 = vld [vmem:[#allocation2 + $0x30] sm:$0xff]
      %v683 = vld [vmem:[%s8] sm:$0xff]
      %v684 = vld [vmem:[%s8 + $0x8] sm:$0xff]
      %v685 = vld [vmem:[%s8 + $0x10] sm:$0xff]
      %v686 = vld [vmem:[%s8 + $0x18] sm:$0xff]
      %688 = vset.pattern.permute.xlu0 0
      %689 = vperm.xlu0 %688, %v683
      %v690 = vpop.permute.xlu0 %689
      %693 = vset.pattern.permute.xlu0 0
      %694 = vperm.xlu0 %693, %v684
      %v695 = vpop.permute.xlu0 %694
      %698 = vset.pattern.permute.xlu0 0
      %699 = vperm.xlu0 %698, %v685
      %v700 = vpop.permute.xlu0 %699
      %703 = vset.pattern.permute.xlu0 0
      %704 = vperm.xlu0 %703, %v686
      %v705 = vpop.permute.xlu0 %704
      %vm707 = vcmask 457728
      %v709 = vsel %vm707, %v672, 0
      %v712 = vsel %vm707, %v673, 0
      %v715 = vsel %vm707, %v674, 0
      %v718 = vsel %vm707, %v675, 0
      %720 = vmatprep.subr.mxu0 0.0
      %721 = vmatpush1.msra.mxu0 0.0
      %722 = vmatprep.subr.mxu0 0.0
      %723 = vmatpush1.msra.mxu0 0.0
      %724 = vmatprep.subr.mxu0 0.0
      %725 = vmatpush1.msra.mxu0 0.0
      %726 = vmatprep.subr.mxu0 0.0
      %727 = vmatpush1.msra.mxu0 0.0
      %728 = vmatprep.subr.mxu0 0.0
      %729 = vmatpush1.msra.mxu0 0.0
      %730 = vmatprep.subr.mxu0 0.0
      %731 = vmatpush1.msra.mxu0 0.0
      %732 = vmatprep.subr.mxu0 0.0
      %733 = vmatpush1.msra.mxu0 0.0
      %734 = vmatprep.subr.mxu0 0.0
      %735 = vmatpush1.msra.mxu0 0.0
      %736 = vmatprep.subr.mxu0 0.0
      %737 = vmatpush1.msra.mxu0 0.0
      %738 = vmatprep.subr.mxu0 0.0
      %739 = vmatpush1.msra.mxu0 %v682
      %740 = vmatprep.subr.mxu0 0.0
      %741 = vmatpush1.msra.mxu0 %v681
      %742 = vmatprep.subr.mxu0 0.0
      %743 = vmatpush1.msra.mxu0 %v680
      %744 = vmatprep.subr.mxu0 0.0
      %745 = vmatpush1.msra.mxu0 %v679
      %746 = vmatprep.subr.mxu0 0.0
      %747 = vmatpush1.msra.mxu0 %v678
      %748 = vmatprep.subr.mxu0 0.0
      %749 = vmatpush1.msra.mxu0 %v677
      %750 = vmatprep.subr.mxu0 0.0
      %751 = vmatpush1.msra.mxu0 %v676
      %752 = vmatprep.subr.mxu0 0.0
      %753 = vmatpush2.msra.mxu0 0.0
      %754 = vmatprep.subr.mxu0 0.0
      %755 = vmatpush2.msra.mxu0 0.0
      %756 = vmatprep.subr.mxu0 0.0
      %757 = vmatpush2.msra.mxu0 0.0
      %758 = vmatprep.subr.mxu0 0.0
      %759 = vmatpush2.msra.mxu0 0.0
      %760 = vmatprep.subr.mxu0 0.0
      %761 = vmatpush2.msra.mxu0 0.0
      %762 = vmatprep.subr.mxu0 0.0
      %763 = vmatpush2.msra.mxu0 0.0
      %764 = vmatprep.subr.mxu0 0.0
      %765 = vmatpush2.msra.mxu0 0.0
      %766 = vmatprep.subr.mxu0 0.0
      %767 = vmatpush2.msra.mxu0 0.0
      %768 = vmatprep.subr.mxu0 0.0
      %769 = vmatpush2.msra.mxu0 0.0
      %770 = vmatprep.subr.mxu0 0.0
      %771 = vmatpush2.msra.mxu0 0.0
      %772 = vmatprep.subr.mxu0 0.0
      %773 = vmatpush2.msra.mxu0 0.0
      %774 = vmatprep.subr.mxu0 0.0
      %775 = vmatpush2.msra.mxu0 0.0
      %776 = vmatprep.subr.mxu0 0.0
      %777 = vmatpush2.msra.mxu0 0.0
      %778 = vmatprep.subr.mxu0 0.0
      %779 = vmatpush2.msra.mxu0 0.0
      %780 = vmatprep.subr.mxu0 0.0
      %781 = vmatpush2.msra.mxu0 0.0
      %782 = vmatprep.subr.mxu0 0.0
      %783 = vmatpush2.msra.mxu0 0.0
      %784 = vmatprep.mubr.f32.mxu0 0.0
      %785 = vmatmul.mubr.f32.gmra.mxu0 %v709
      %v786 = vpop.f32.mrf.mxu0
      %v787 = vadd.f32 %v690, %v786
      %v788 = vpop.f32.mrf.mxu0
      %789 = vmatprep.mubr.f32.mxu0 0.0
      %790 = vmatmul.mubr.f32.gmra.mxu0 %v712
      %v791 = vpop.f32.mrf.mxu0
      %v792 = vadd.f32 %v695, %v791
      %v793 = vpop.f32.mrf.mxu0
      %794 = vmatprep.mubr.f32.mxu0 0.0
      %795 = vmatmul.mubr.f32.gmra.mxu0 %v715
      %v796 = vpop.f32.mrf.mxu0
      %v797 = vadd.f32 %v700, %v796
      %v798 = vpop.f32.mrf.mxu0
      %799 = vmatprep.mubr.f32.mxu0 0.0
      %800 = vmatmul.mubr.f32.gmra.mxu0 %v718
      %v801 = vpop.f32.mrf.mxu0
      %v802 = vadd.f32 %v705, %v801
      %v803 = vpop.f32.mrf.mxu0
      %804 = vdwg.mxu0
      %v805 = vmax.f32 %v787, 0.0
      %v806 = vmax.f32 %v792, 0.0
      %v807 = vmax.f32 %v797, 0.0
      %v808 = vmax.f32 %v802, 0.0
      %809 = vst [vmem:[%s360] sm:$0xff] %v805
      %810 = vst [vmem:[%s360 + $0x8] sm:$0xff] %v806
      %811 = vst [vmem:[%s360 + $0x10] sm:$0xff] %v807
      %812 = vst [vmem:[%s360 + $0x18] sm:$0xff] %v808
      %p813 = scmp.lt.s32.totalorder %s24, 1
      %s814 = scalar_select %p813, %s24, 1
      %p815 = scmp.lt.s32.totalorder %s25, 0
      %s816 = scalar_select %p815, %s25, 0
      %s817 = smul.addr %s814, 4
      %s818 = sadd.s32 %s816, %s817
      %s819 = smul.addr %s818, 8
      %s820 = scalar_lea.vmem %s9, %s819
      // Predicated region
      $region57: #{dense_net_2d.1} parent=55 // pred_check
        %p821 = pneg %p248
      $region58: #{dense_net_2d.1} parent=55 // pred_check_branch
        %823 = sbr.rel (%p821) target = $region60
      $region59: #{dense_net_2d.1} parent=55 // pred_region
        _
      $region60: #{dense_net_2d.1} parent=55 // pred_fallthru
        _
    $region56: #{dense_net_2d.1} parent=5 // pred_fallthru
      _
    %p824 = scmp.le.s32.totalorder 2, %s15
    // Predicated region
    $region61: #{dense_net_2d.1} parent=5 // pred_check
      %p825 = pneg %p824
    $region62: #{dense_net_2d.1} parent=5 // pred_check_branch
      %827 = sbr.rel (%p825) target = $region64
    $region63: #{dense_net_2d.1} parent=5 // pred_region
      %s828 = ssub.s32 %s15, 2
      // Predicated region
      $region65: #{dense_net_2d.1} parent=63 // pred_check
        %p829 = pneg %p254
      $region66: #{dense_net_2d.1} parent=63 // pred_check_branch
        %831 = sbr.rel (%p829) target = $region68
      $region67: #{dense_net_2d.1} parent=63 // pred_region
        %p832 = scmp.lt.s32.totalorder %s26, 1
        %s833 = scalar_select %p832, %s26, 1
        %p834 = scmp.lt.s32.totalorder %s27, 0
        %s835 = scalar_select %p834, %s27, 0
        %s836 = smul.addr %s833, 4
        %s837 = sadd.s32 %s835, %s836
        %s838 = smul.addr %s837, 8
        %s839 = scalar_lea.vmem %s9, %s838
      $region68: #{dense_net_2d.1} parent=63 // pred_fallthru
        _
    $region64: #{dense_net_2d.1} parent=5 // pred_fallthru
      _
  $region6: #{dense_net_2d.1} parent=0 // loop_footer
    %s19 = sadd.s32 1, %s15
  $region7: #{dense_net_2d.1} parent=0 // loop_footer_branch
    %14 = sbr.rel target = $region3
  $region8: #{dense_net_2d.1} parent=0 // loop_exit
    _

</llo_original>
